<compile_context>
chip_gen: v7x
topology: tpu7x:2x2x1
jax: 0.10.0
libtpu: 0.0.40
codegen_flags: <defaults>
</compile_context>

<pallas_src>
import math
from functools import partial

import jax
import jax.numpy as jnp
from jax.experimental import pallas as pl
from jax.experimental.pallas import tpu as pltpu


def _mha_kernel(q_ref, k_ref, v_ref,
                w_qkv_ref, b_qkv_ref,
                wo_ref, bo_ref,
                out_ref,
                acc_ref,
                *, scale: float):
    h = pl.program_id(1)

    @pl.when(h == 0)
    def _init():
        acc_ref[...] = jnp.zeros_like(acc_ref)

    # Stack q/k/v activations so this head's three projections run as a single
    # batched MXU stream against the pre-transposed (3, C, D) weight block.
    x = jnp.stack([q_ref[0], k_ref[0], v_ref[0]], axis=0)          # (3, N, C), native dtype
    w = w_qkv_ref[0]                                               # (3, C, D), pre-transposed

    proj = jax.lax.dot_general(
        x, w, dimension_numbers=(((2,), (1,)), ((0,), (0,))),
        preferred_element_type=jnp.float32)                        # (3, N, D) f32 accum
    proj = (proj + b_qkv_ref[0]).astype(x.dtype)                   # back to native dtype
    Qh, Kh, Vh = proj[0], proj[1], proj[2]                         # (N, D) each

    # Scaled dot-product attention for this head; scores/softmax in f32.
    s = jax.lax.dot_general(
        Qh, Kh, dimension_numbers=(((1,), (1,)), ((), ())),        # Q @ K^T, no transpose op
        preferred_element_type=jnp.float32) * scale                # (N, N)
    s = s - jnp.max(s, axis=-1, keepdims=True)
    p = jnp.exp(s)
    denom = jnp.sum(p, axis=-1, keepdims=True)
    o_h = jnp.dot(p.astype(Vh.dtype), Vh,
                  preferred_element_type=jnp.float32)              # (N, D), unnormalized
    o_h = o_h * pl.reciprocal(denom, approx=True)                  # fold 1/sum after P@V

    # Per-head slice of the output projection, accumulated across heads in VMEM.
    acc_ref[...] += jnp.dot(o_h.astype(wo_ref.dtype), wo_ref[0],
                            preferred_element_type=jnp.float32)    # (N, C)

    @pl.when(h == pl.num_programs(1) - 1)
    def _store():
        out_ref[0] = (acc_ref[...] + bo_ref[...]).astype(out_ref.dtype)


def attention_block_pallas(query, key, value, params, *, num_heads: int):
    """query/key/value: (B, N, C).  Returns attention output (B, N, C)."""
    B, N, C = query.shape
    assert C % num_heads == 0, "embed_dim must be divisible by num_heads"
    D = C // num_heads
    wq, wk, wv, bq, bk, bv, wo, bo = params

    # ---- one-time host-side weight layout: pre-transpose + per-head split + q/k/v stack
    def per_head_t(w):  # (C, C) torch-Linear weight -> (H, C, D) == W^T split by head
        return w.T.reshape(C, num_heads, D).transpose(1, 0, 2)

    w_qkv = jnp.stack([per_head_t(wq), per_head_t(wk), per_head_t(wv)], axis=1)  # (H,3,C,D)
    b_qkv = jnp.stack([bq.reshape(num_heads, D),
                       bk.reshape(num_heads, D),
                       bv.reshape(num_heads, D)], axis=1).reshape(num_heads, 3, 1, D)
    wo_h = wo.T.reshape(num_heads, D, C)                                          # (H,D,C)
    bo_r = bo.reshape(1, C)

    seq_spec = pl.BlockSpec((1, N, C), lambda b, h: (b, 0, 0))

    kernel = partial(_mha_kernel, scale=1.0 / math.sqrt(D))

    return pl.pallas_call(
        kernel,
        out_shape=jax.ShapeDtypeStruct((B, N, C), query.dtype),
        grid_spec=pltpu.PrefetchScalarGridSpec(
            num_scalar_prefetch=0,
            grid=(B, num_heads),
            in_specs=[
                seq_spec, seq_spec, seq_spec,                                   # q, k, v
                pl.BlockSpec((1, 3, C, D), lambda b, h: (h, 0, 0, 0)),          # fused qkv W^T
                pl.BlockSpec((1, 3, 1, D), lambda b, h: (h, 0, 0, 0)),          # fused qkv bias
                pl.BlockSpec((1, D, C), lambda b, h: (h, 0, 0)),                # out-proj W^T slice
                pl.BlockSpec((1, C), lambda b, h: (0, 0)),                      # out-proj bias
            ],
            out_specs=pl.BlockSpec((1, N, C), lambda b, h: (b, 0, 0)),
            scratch_shapes=[pltpu.VMEM((N, C), jnp.float32)],                   # head accumulator
        ),
        compiler_params=pltpu.CompilerParams(
            dimension_semantics=("parallel", "arbitrary"),
            vmem_limit_bytes=64 * 1024 * 1024,
        ),
    )(query, key, value, w_qkv, b_qkv, wo_h, bo_r)


def _reference_mha(query, key, value, params, num_heads):
    """Pure-JAX reference matching nn.MultiheadAttention (eval mode, no mask)."""
    wq, wk, wv, bq, bk, bv, wo, bo = params
    B, N, C = query.shape
    D = C // num_heads
    Q = query @ wq.T + bq
    K = key @ wk.T + bk
    V = value @ wv.T + bv
    Q = Q.reshape(B, N, num_heads, D).transpose(0, 2, 1, 3)
    K = K.reshape(B, N, num_heads, D).transpose(0, 2, 1, 3)
    V = V.reshape(B, N, num_heads, D).transpose(0, 2, 1, 3)
    s = jnp.einsum("bhnd,bhmd->bhnm", Q, K) / math.sqrt(D)
    p = jax.nn.softmax(s, axis=-1)
    o = jnp.einsum("bhnm,bhmd->bhnd", p, V)
    o = o.transpose(0, 2, 1, 3).reshape(B, N, C)
    return o @ wo.T + bo


if __name__ == "__main__":
    # Module defaults: hidden_size=256 (lane-dense, multiple of 128), num_heads=4.
    B, N, C = 2, 8, 256
    num_heads = 4

    key0 = jax.random.PRNGKey(0)
    keys = jax.random.split(key0, 12)

    # Synthetic parameters following nn.MultiheadAttention shapes:
    # in_proj_weight (3C, C) split into Wq/Wk/Wv, in_proj_bias (3C,),
    # out_proj.weight (C, C), out_proj.bias (C,).
    scale = 1.0 / math.sqrt(C)
    wq = jax.random.uniform(keys[0], (C, C), jnp.float32, -scale, scale)
    wk = jax.random.uniform(keys[1], (C, C), jnp.float32, -scale, scale)
    wv = jax.random.uniform(keys[2], (C, C), jnp.float32, -scale, scale)
    bq = jax.random.uniform(keys[3], (C,), jnp.float32, -scale, scale)
    bk = jax.random.uniform(keys[4], (C,), jnp.float32, -scale, scale)
    bv = jax.random.uniform(keys[5], (C,), jnp.float32, -scale, scale)
    wo = jax.random.uniform(keys[6], (C, C), jnp.float32, -scale, scale)
    bo = jax.random.uniform(keys[7], (C,), jnp.float32, -scale, scale)
    params = (wq, wk, wv, bq, bk, bv, wo, bo)

    query = jax.random.normal(keys[8], (B, N, C), jnp.float32)
    key_in = jax.random.normal(keys[9], (B, N, C), jnp.float32)
    value = jax.random.normal(keys[10], (B, N, C), jnp.float32)

    out = attention_block_pallas(query, key_in, value, params, num_heads=num_heads)
    out = jax.block_until_ready(out)

    ref = _reference_mha(query, key_in, value, params, num_heads)
    assert out.shape == (B, N, C)
    # Tolerance loosened slightly because the softmax denominator uses the
    # approximate (EUP) reciprocal; still far tighter than bf16 attention tolerances.
    assert jnp.allclose(out, ref, atol=2e-3, rtol=2e-3), "mismatch vs reference"

    print("KERNEL_OK")
</pallas_src>

<mosaic_0001>
module attributes {stable_mosaic.version = 11 : i64} {
  func.func @_mha_kernel(%arg0: i32, %arg1: i32, %arg2: memref<1x8x256xf32, #tpu.memory_space<vmem>>, %arg3: memref<1x8x256xf32, #tpu.memory_space<vmem>>, %arg4: memref<1x8x256xf32, #tpu.memory_space<vmem>>, %arg5: memref<1x3x256x64xf32, #tpu.memory_space<vmem>>, %arg6: memref<1x3x1x64xf32, #tpu.memory_space<vmem>>, %arg7: memref<1x64x256xf32, #tpu.memory_space<vmem>>, %arg8: memref<1x256xf32, #tpu.memory_space<vmem>>, %arg9: memref<1x8x256xf32, #tpu.memory_space<vmem>>, %arg10: memref<8x256xf32, #tpu.memory_space<vmem>>) attributes {dimension_semantics = [#tpu.dimension_semantics<parallel>, #tpu.dimension_semantics<arbitrary>], iteration_bounds = array<i64: 2, 4>, scalar_prefetch = 0 : i64, scratch_operands = 1 : i64, tpu.core_type = #tpu.core_type<tc>, window_params = [{transform_indices = @transform_0, window_bounds = array<i64: 1, 8, 256>}, {transform_indices = @transform_1, window_bounds = array<i64: 1, 8, 256>}, {transform_indices = @transform_2, window_bounds = array<i64: 1, 8, 256>}, {transform_indices = @transform_3, window_bounds = array<i64: 1, 3, 256, 64>}, {transform_indices = @transform_4, window_bounds = array<i64: 1, 3, 1, 64>}, {transform_indices = @transform_5, window_bounds = array<i64: 1, 64, 256>}, {pipeline_mode = #tpu.pipeline_mode<synchronous>, transform_indices = @transform_6, window_bounds = array<i64: 1, 256>}, {transform_indices = @transform_7, window_bounds = array<i64: 1, 8, 256>}]} {
    %c0_i32 = arith.constant 0 : i32
    %0 = arith.cmpi eq, %arg1, %c0_i32 : i32
    %1 = arith.extui %0 : i1 to i32
    %c0_i32_0 = arith.constant 0 : i32
    %2 = arith.cmpi ne, %1, %c0_i32_0 : i32
    scf.if %2 {
      %cst_31 = arith.constant 0.000000e+00 : f32
      %49 = vector.broadcast %cst_31 : f32 to vector<8x256xf32>
      %c0_32 = arith.constant 0 : index
      %c0_33 = arith.constant 0 : index
      %50 = vector.load %arg10[%c0_32, %c0_33] : memref<8x256xf32, #tpu.memory_space<vmem>>, vector<8x256xf32>
      tpu.vector_store %arg10[%c0_32, %c0_33], %49 {strides = array<i32>} : memref<8x256xf32, #tpu.memory_space<vmem>>, vector<8x256xf32>,
    } else {
    }
    %c0 = arith.constant 0 : index
    %c0_1 = arith.constant 0 : index
    %c0_2 = arith.constant 0 : index
    %3 = vector.load %arg2[%c0, %c0_1, %c0_2] : memref<1x8x256xf32, #tpu.memory_space<vmem>>, vector<1x8x256xf32>
    %4 = vector.shape_cast %3 : vector<1x8x256xf32> to vector<8x256xf32>
    %c0_3 = arith.constant 0 : index
    %c0_4 = arith.constant 0 : index
    %c0_5 = arith.constant 0 : index
    %5 = vector.load %arg3[%c0_3, %c0_4, %c0_5] : memref<1x8x256xf32, #tpu.memory_space<vmem>>, vector<1x8x256xf32>
    %6 = vector.shape_cast %5 : vector<1x8x256xf32> to vector<8x256xf32>
    %c0_6 = arith.constant 0 : index
    %c0_7 = arith.constant 0 : index
    %c0_8 = arith.constant 0 : index
    %7 = vector.load %arg4[%c0_6, %c0_7, %c0_8] : memref<1x8x256xf32, #tpu.memory_space<vmem>>, vector<1x8x256xf32>
    %8 = vector.shape_cast %7 : vector<1x8x256xf32> to vector<8x256xf32>
    %9 = vector.shape_cast %4 : vector<8x256xf32> to vector<1x8x256xf32>
    %10 = vector.shape_cast %6 : vector<8x256xf32> to vector<1x8x256xf32>
    %11 = vector.shape_cast %8 : vector<8x256xf32> to vector<1x8x256xf32>
    %12 = tpu.concatenate %9, %10, %11 in 0 : vector<1x8x256xf32>, vector<1x8x256xf32>, vector<1x8x256xf32> -> vector<3x8x256xf32>
    %c0_9 = arith.constant 0 : index
    %c0_10 = arith.constant 0 : index
    %c0_11 = arith.constant 0 : index
    %c0_12 = arith.constant 0 : index
    %13 = vector.load %arg5[%c0_9, %c0_10, %c0_11, %c0_12] : memref<1x3x256x64xf32, #tpu.memory_space<vmem>>, vector<1x3x256x64xf32>
    %14 = vector.shape_cast %13 : vector<1x3x256x64xf32> to vector<3x256x64xf32>
    %cst = arith.constant dense<0.000000e+00> : vector<3x8x64xf32>
    %15 = tpu.matmul %12, %14, %cst {dimension_numbers = #tpu.dot_dimension_numbers<[2], [1], [1], [2], [0, 0, 0, 1, 1, 2], [0], [0]>} : vector<3x8x256xf32>, vector<3x256x64xf32>, vector<3x8x64xf32> -> vector<3x8x64xf32>
    %c0_13 = arith.constant 0 : index
    %c0_14 = arith.constant 0 : index
    %c0_15 = arith.constant 0 : index
    %c0_16 = arith.constant 0 : index
    %16 = vector.load %arg6[%c0_13, %c0_14, %c0_15, %c0_16] : memref<1x3x1x64xf32, #tpu.memory_space<vmem>>, vector<1x3x1x64xf32>
    %17 = vector.shape_cast %16 : vector<1x3x1x64xf32> to vector<3x1x64xf32>
    %18 = vector.broadcast %17 : vector<3x1x64xf32> to vector<3x8x64xf32>
    %19 = arith.addf %15, %18 : vector<3x8x64xf32>
    %20 = vector.extract_strided_slice %19 {offsets = [0, 0, 0], sizes = [1, 8, 64], strides = [1, 1, 1]} : vector<3x8x64xf32> to vector<1x8x64xf32>
    %21 = vector.shape_cast %20 : vector<1x8x64xf32> to vector<8x64xf32>
    %22 = vector.extract_strided_slice %19 {offsets = [1, 0, 0], sizes = [1, 8, 64], strides = [1, 1, 1]} : vector<3x8x64xf32> to vector<1x8x64xf32>
    %23 = vector.shape_cast %22 : vector<1x8x64xf32> to vector<8x64xf32>
    %24 = vector.extract_strided_slice %19 {offsets = [2, 0, 0], sizes = [1, 8, 64], strides = [1, 1, 1]} : vector<3x8x64xf32> to vector<1x8x64xf32>
    %25 = vector.shape_cast %24 : vector<1x8x64xf32> to vector<8x64xf32>
    %cst_17 = arith.constant dense<0.000000e+00> : vector<8x8xf32>
    %26 = tpu.matmul %21, %23, %cst_17 {dimension_numbers = #tpu.dot_dimension_numbers<[1], [1], [0], [0], [0, 0, 1, 0], [], []>} : vector<8x64xf32>, vector<8x64xf32>, vector<8x8xf32> -> vector<8x8xf32>
    %cst_18 = arith.constant 1.250000e-01 : f32
    %27 = vector.broadcast %cst_18 : f32 to vector<8x8xf32>
    %28 = arith.mulf %26, %27 : vector<8x8xf32>
    %cst_19 = arith.constant dense<0xFF800000> : vector<8xf32>
    %29 = vector.multi_reduction <maximumf>, %28, %cst_19 [1] : vector<8x8xf32> to vector<8xf32>
    %30 = vector.shape_cast %29 : vector<8xf32> to vector<8x1xf32>
    %31 = vector.broadcast %30 : vector<8x1xf32> to vector<8x8xf32>
    %32 = arith.subf %28, %31 : vector<8x8xf32>
    %33 = math.exp %32 : vector<8x8xf32>
    %cst_20 = arith.constant dense<0.000000e+00> : vector<8xf32>
    %34 = vector.multi_reduction <add>, %33, %cst_20 [1] : vector<8x8xf32> to vector<8xf32>
    %35 = vector.shape_cast %34 : vector<8xf32> to vector<8x1xf32>
    %cst_21 = arith.constant dense<0.000000e+00> : vector<8x64xf32>
    %36 = tpu.matmul %33, %25, %cst_21 {dimension_numbers = #tpu.dot_dimension_numbers<[1], [0], [0], [1], [0, 0, 1, 1], [], []>} : vector<8x8xf32>, vector<8x64xf32>, vector<8x64xf32> -> vector<8x64xf32>
    %37 = tpu.reciprocal %35 {approx = true} : vector<8x1xf32> -> vector<8x1xf32>
    %38 = vector.broadcast %37 : vector<8x1xf32> to vector<8x64xf32>
    %39 = arith.mulf %36, %38 : vector<8x64xf32>
    %c0_22 = arith.constant 0 : index
    %c0_23 = arith.constant 0 : index
    %40 = vector.load %arg10[%c0_22, %c0_23] : memref<8x256xf32, #tpu.memory_space<vmem>>, vector<8x256xf32>
    %c0_24 = arith.constant 0 : index
    %c0_25 = arith.constant 0 : index
    %c0_26 = arith.constant 0 : index
    %41 = vector.load %arg7[%c0_24, %c0_25, %c0_26] : memref<1x64x256xf32, #tpu.memory_space<vmem>>, vector<1x64x256xf32>
    %42 = vector.shape_cast %41 : vector<1x64x256xf32> to vector<64x256xf32>
    %cst_27 = arith.constant dense<0.000000e+00> : vector<8x256xf32>
    %43 = tpu.matmul %39, %42, %cst_27 {dimension_numbers = #tpu.dot_dimension_numbers<[1], [0], [0], [1], [0, 0, 1, 1], [], []>} : vector<8x64xf32>, vector<64x256xf32>, vector<8x256xf32> -> vector<8x256xf32>
    %44 = arith.addf %40, %43 : vector<8x256xf32>
    %c0_28 = arith.constant 0 : index
    %c0_29 = arith.constant 0 : index
    %45 = vector.load %arg10[%c0_28, %c0_29] : memref<8x256xf32, #tpu.memory_space<vmem>>, vector<8x256xf32>
    tpu.vector_store %arg10[%c0_28, %c0_29], %44 {strides = array<i32>} : memref<8x256xf32, #tpu.memory_space<vmem>>, vector<8x256xf32>,
    %c3_i32 = arith.constant 3 : i32
    %46 = arith.cmpi eq, %arg1, %c3_i32 : i32
    %47 = arith.extui %46 : i1 to i32
    %c0_i32_30 = arith.constant 0 : i32
    %48 = arith.cmpi ne, %47, %c0_i32_30 : i32
    scf.if %48 {
      %c0_31 = arith.constant 0 : index
      %c0_32 = arith.constant 0 : index
      %49 = vector.load %arg10[%c0_31, %c0_32] : memref<8x256xf32, #tpu.memory_space<vmem>>, vector<8x256xf32>
      %c0_33 = arith.constant 0 : index
      %c0_34 = arith.constant 0 : index
      %50 = vector.load %arg8[%c0_33, %c0_34] : memref<1x256xf32, #tpu.memory_space<vmem>>, vector<1x256xf32>
      %51 = vector.broadcast %50 : vector<1x256xf32> to vector<8x256xf32>
      %52 = arith.addf %49, %51 : vector<8x256xf32>
      %c0_35 = arith.constant 0 : index
      %c0_36 = arith.constant 0 : index
      %c0_37 = arith.constant 0 : index
      %53 = vector.load %arg9[%c0_35, %c0_36, %c0_37] : memref<1x8x256xf32, #tpu.memory_space<vmem>>, vector<1x8x256xf32>
      %54 = vector.shape_cast %53 : vector<1x8x256xf32> to vector<8x256xf32>
      %55 = vector.shape_cast %52 : vector<8x256xf32> to vector<1x8x256xf32>
      tpu.vector_store %arg9[%c0_35, %c0_36, %c0_37], %55 {strides = array<i32>} : memref<1x8x256xf32, #tpu.memory_space<vmem>>, vector<1x8x256xf32>,
    } else {
    }
    return
  }
  func.func @transform_0(%arg0: i32, %arg1: i32) -> (i32, i32, i32) {
    %c0_i32 = arith.constant 0 : i32
    %c0_i32_0 = arith.constant 0 : i32
    %c0_i32_1 = arith.constant 0 : i32
    return %arg0, %c0_i32, %c0_i32_0 : i32, i32, i32
  }
  func.func @transform_1(%arg0: i32, %arg1: i32) -> (i32, i32, i32) {
    %c0_i32 = arith.constant 0 : i32
    %c0_i32_0 = arith.constant 0 : i32
    %c0_i32_1 = arith.constant 0 : i32
    return %arg0, %c0_i32, %c0_i32_0 : i32, i32, i32
  }
  func.func @transform_2(%arg0: i32, %arg1: i32) -> (i32, i32, i32) {
    %c0_i32 = arith.constant 0 : i32
    %c0_i32_0 = arith.constant 0 : i32
    %c0_i32_1 = arith.constant 0 : i32
    return %arg0, %c0_i32, %c0_i32_0 : i32, i32, i32
  }
  func.func @transform_3(%arg0: i32, %arg1: i32) -> (i32, i32, i32, i32) {
    %c0_i32 = arith.constant 0 : i32
    %c0_i32_0 = arith.constant 0 : i32
    %c0_i32_1 = arith.constant 0 : i32
    %c0_i32_2 = arith.constant 0 : i32
    return %arg1, %c0_i32, %c0_i32_0, %c0_i32_1 : i32, i32, i32, i32
  }
  func.func @transform_4(%arg0: i32, %arg1: i32) -> (i32, i32, i32, i32) {
    %c0_i32 = arith.constant 0 : i32
    %c0_i32_0 = arith.constant 0 : i32
    %c0_i32_1 = arith.constant 0 : i32
    %c0_i32_2 = arith.constant 0 : i32
    return %arg1, %c0_i32, %c0_i32_0, %c0_i32_1 : i32, i32, i32, i32
  }
  func.func @transform_5(%arg0: i32, %arg1: i32) -> (i32, i32, i32) {
    %c0_i32 = arith.constant 0 : i32
    %c0_i32_0 = arith.constant 0 : i32
    %c0_i32_1 = arith.constant 0 : i32
    return %arg1, %c0_i32, %c0_i32_0 : i32, i32, i32
  }
  func.func @transform_6(%arg0: i32, %arg1: i32) -> (i32, i32) {
    %c0_i32 = arith.constant 0 : i32
    %c0_i32_0 = arith.constant 0 : i32
    %c0_i32_1 = arith.constant 0 : i32
    return %c0_i32, %c0_i32_0 : i32, i32
  }
  func.func @transform_7(%arg0: i32, %arg1: i32) -> (i32, i32, i32) {
    %c0_i32 = arith.constant 0 : i32
    %c0_i32_0 = arith.constant 0 : i32
    %c0_i32_1 = arith.constant 0 : i32
    return %arg0, %c0_i32, %c0_i32_0 : i32, i32, i32
  }
}

</mosaic_0001>

<llo_original>
// kernel: tpu_custom_call.1
$region0: #{tpu_custom_call.1}
  #allocation0 [shape = 'u32[]', space=smem, size = 0x4, offset = 0x4, fixed_abs, tag = 'smem constant byte address 0x4 - core index']
  #allocation1 [shape = 'u32[144,128]{1,0:T(1,128)}', space=vmem, size = 0x12000, scoped, tag = 'internal scratch']
  #allocation2 [shape = 'f32[8,256]{1,0:T(8,128)}', space=vmem, size = 0x2000, scoped, tag = 'scratch operand']
  %s0 = inlined_call_operand.hbm [shape: f32[2,8,256], index: 0, kind: input, shape index: {}]
  %s1 = inlined_call_operand.hbm [shape: f32[2,8,256], index: 1, kind: input, shape index: {}]
  %s2 = inlined_call_operand.hbm [shape: f32[2,8,256], index: 2, kind: input, shape index: {}]
  %s3 = inlined_call_operand.hbm [shape: f32[4,3,256,64], index: 3, kind: input, shape index: {}]
  %s4 = inlined_call_operand.hbm [shape: f32[4,3,1,64], index: 4, kind: input, shape index: {}]
  %s5 = inlined_call_operand.hbm [shape: f32[4,64,256], index: 5, kind: input, shape index: {}]
  %s6 = inlined_call_operand.hbm [shape: f32[1,256], index: 6, kind: input, shape index: {}]
  %s7 = inlined_call_operand.hbm [shape: f32[2,8,256], index: 7, kind: output, shape index: {}]
  %s8 = sld [smem:[#allocation0]]
  $region97: #{tpu_custom_call.1} parent=0
    _
  %s10 = ssub.s32 1, %s8
  %s11 = scalar_select 0, %s10, %s8
  $region1: #{tpu_custom_call.1} parent=0
    #allocation3 [shape = 'u8[16384]{0}', space=vmem, size = 0x4000, scoped, tag = 'input window, operand 0']
    #allocation4 [shape = 's32[2]{0}', space=sflag, size = 0x8, scoped, tag = 'scoped memory for tpu_custom_call.1']
    #allocation5 [shape = 's32[2]{0}', space=sflag, size = 0x8, scoped, tag = 'scoped memory for tpu_custom_call.1']
    #allocation6 [shape = 'u8[16384]{0}', space=vmem, size = 0x4000, scoped, tag = 'input window, operand 1']
    #allocation7 [shape = 's32[2]{0}', space=sflag, size = 0x8, scoped, tag = 'scoped memory for tpu_custom_call.1']
    #allocation8 [shape = 'u8[16384]{0}', space=vmem, size = 0x4000, scoped, tag = 'input window, operand 2']
    #allocation9 [shape = 'u8[786432]{0}', space=vmem, size = 0xc0000, scoped, tag = 'input window, operand 3']
    #allocation10 [shape = 's32[2]{0}', space=sflag, size = 0x8, scoped, tag = 'scoped memory for tpu_custom_call.1']
    #allocation11 [shape = 'u8[3072]{0}', space=vmem, size = 0xc00, scoped, tag = 'input window, operand 4']
    #allocation12 [shape = 'u8[131072]{0}', space=vmem, size = 0x20000, scoped, tag = 'input window, operand 5']
    #allocation13 [shape = 's32[2]{0}', space=sflag, size = 0x8, scoped, tag = 'scoped memory for tpu_custom_call.1']
    #allocation14 [shape = 'u8[1024]{0}', space=vmem, size = 0x400, scoped, tag = 'input window, operand 6, single buffered']
    #allocation15 [shape = 'u8[16384]{0}', space=vmem, size = 0x4000, scoped, tag = 'output window, operand 0']
    %12 = vsyncpa [#allocation4], 0
    %s13 = scalar_lea.sflag [#allocation4], 1
    %14 = vsyncpa %s13, 0
    %15 = vsyncpa [#allocation7], 0
    %s16 = scalar_lea.sflag [#allocation7], 1
    %17 = vsyncpa %s16, 0
    %18 = vsyncpa [#allocation10], 0
    %s19 = scalar_lea.sflag [#allocation10], 1
    %20 = vsyncpa %s19, 0
    %21 = vsyncpa [#allocation13], 0
    %s22 = scalar_lea.sflag [#allocation13], 1
    %23 = vsyncpa %s22, 0
    %24 = vsyncpa [#allocation5], 0
    %s25 = scalar_lea.sflag [#allocation5], 1
    %26 = vsyncpa %s25, 0
    loop: start=0, step=1, limit=10
    $region2: #{tpu_custom_call.1} parent=1 // loop_pre_header
      _
    $region3: #{tpu_custom_call.1} parent=1 // loop_header
      %s28 = sphi 0, %s32
      %p29 = scmp.ge.s32.totalorder %s28, 10
      %s35 = sphi 0, %s47
      %s36 = sphi 0, %s43
      %s37 = sphi 0, %s35
      %s38 = sphi 0, %s36
      %s39 = sphi 0, %s37
      %s40 = sphi 0, %s38
      %s50 = sphi 0, %s52
      %s53 = sphi 0, %s50
      %s54 = sphi 0, %s53
      %s70 = sphi 0, %s54
      %s76 = sphi 0, %s78
      %s79 = sphi 0, %s76
      %s80 = sphi 0, %s79
      %s96 = sphi 0, %s80
      %s102 = sphi 0, %s104
      %s105 = sphi 0, %s102
      %s106 = sphi 0, %s105
      %s122 = sphi 0, %s106
      %s128 = sphi 0, %s130
      %s131 = sphi 0, %s128
      %s132 = sphi 0, %s131
      %s148 = sphi 0, %s132
      %s154 = sphi 0, %s156
      %s157 = sphi 0, %s154
      %s158 = sphi 0, %s157
      %s174 = sphi 0, %s158
      %s180 = sphi 0, %s182
      %s183 = sphi 0, %s180
      %s184 = sphi 0, %s183
      %s200 = sphi 0, %s184
      %s204 = sphi 0, %s204
      %s206 = sphi 0, %s204
      %s207 = sphi 0, %s206
      %s221 = sphi 0, %s207
      %s227 = sphi 0, %s229
      %s230 = sphi 0, %s227
      %s231 = sphi 0, %s230
      %s247 = sphi 0, %s231
    $region4: #{tpu_custom_call.1} parent=1 // loop_header_branch
      %31 = sbr.rel (%p29) target = $region8
    $region5: #{tpu_custom_call.1} parent=1 // loop_body
      %s33 = ssub.s32 %s28, 1
      %s34 = ssub.s32 %s28, 2
      %s41 = sadd.s32 1, %s36
      %p42 = scmp.ge.s32.totalorder %s41, 4
      %s43 = scalar_select %p42, 0, %s41
      %s44 = sadd.s32 1, %s35
      %s45 = scalar_select %p42, %s44, %s35
      %p46 = scmp.ge.s32.totalorder %s45, 2
      %s47 = scalar_select %p46, 0, %s45
      %s48 = ssub.s32 %s35, %s47
      %p49 = scmp.eq.s32.totalorder %s48, 0
      %s51 = sadd.s32 %s50, 1
      %s52 = scalar_select %p49, %s50, %s51
      %p55 = pneg %p49
      %p56 = scmp.eq.s32.totalorder %s28, 7
      %p57 = por %p55, %p56
      %p58 = scmp.ne.s32.totalorder %s50, %s53
      %p59 = scmp.eq.s32.totalorder %s28, 0
      %p60 = por %p58, %p59
      %p61 = scmp.ne.s32.totalorder %s50, %s53
      %p62 = scmp.eq.s32.totalorder %s33, 7
      %p63 = por %p61, %p62
      %p64 = scmp.ne.s32.totalorder %s53, %s54
      %p65 = scmp.eq.s32.totalorder %s33, 0
      %p66 = por %p64, %p65
      %p67 = scmp.ne.s32.totalorder %s53, %s54
      %p68 = scmp.eq.s32.totalorder %s34, 7
      %p69 = por %p67, %p68
      %p71 = scmp.ne.s32.totalorder %s54, %s70
      %p72 = scmp.eq.s32.totalorder %s34, 0
      %p73 = por %p71, %p72
      %s74 = ssub.s32 %s35, %s47
      %p75 = scmp.eq.s32.totalorder %s74, 0
      %s77 = sadd.s32 %s76, 1
      %s78 = scalar_select %p75, %s76, %s77
      %p81 = pneg %p75
      %p82 = scmp.eq.s32.totalorder %s28, 7
      %p83 = por %p81, %p82
      %p84 = scmp.ne.s32.totalorder %s76, %s79
      %p85 = scmp.eq.s32.totalorder %s28, 0
      %p86 = por %p84, %p85
      %p87 = scmp.ne.s32.totalorder %s76, %s79
      %p88 = scmp.eq.s32.totalorder %s33, 7
      %p89 = por %p87, %p88
      %p90 = scmp.ne.s32.totalorder %s79, %s80
      %p91 = scmp.eq.s32.totalorder %s33, 0
      %p92 = por %p90, %p91
      %p93 = scmp.ne.s32.totalorder %s79, %s80
      %p94 = scmp.eq.s32.totalorder %s34, 7
      %p95 = por %p93, %p94
      %p97 = scmp.ne.s32.totalorder %s80, %s96
      %p98 = scmp.eq.s32.totalorder %s34, 0
      %p99 = por %p97, %p98
      %s100 = ssub.s32 %s35, %s47
      %p101 = scmp.eq.s32.totalorder %s100, 0
      %s103 = sadd.s32 %s102, 1
      %s104 = scalar_select %p101, %s102, %s103
      %p107 = pneg %p101
      %p108 = scmp.eq.s32.totalorder %s28, 7
      %p109 = por %p107, %p108
      %p110 = scmp.ne.s32.totalorder %s102, %s105
      %p111 = scmp.eq.s32.totalorder %s28, 0
      %p112 = por %p110, %p111
      %p113 = scmp.ne.s32.totalorder %s102, %s105
      %p114 = scmp.eq.s32.totalorder %s33, 7
      %p115 = por %p113, %p114
      %p116 = scmp.ne.s32.totalorder %s105, %s106
      %p117 = scmp.eq.s32.totalorder %s33, 0
      %p118 = por %p116, %p117
      %p119 = scmp.ne.s32.totalorder %s105, %s106
      %p120 = scmp.eq.s32.totalorder %s34, 7
      %p121 = por %p119, %p120
      %p123 = scmp.ne.s32.totalorder %s106, %s122
      %p124 = scmp.eq.s32.totalorder %s34, 0
      %p125 = por %p123, %p124
      %s126 = ssub.s32 %s36, %s43
      %p127 = scmp.eq.s32.totalorder %s126, 0
      %s129 = sadd.s32 %s128, 1
      %s130 = scalar_select %p127, %s128, %s129
      %p133 = pneg %p127
      %p134 = scmp.eq.s32.totalorder %s28, 7
      %p135 = por %p133, %p134
      %p136 = scmp.ne.s32.totalorder %s128, %s131
      %p137 = scmp.eq.s32.totalorder %s28, 0
      %p138 = por %p136, %p137
      %p139 = scmp.ne.s32.totalorder %s128, %s131
      %p140 = scmp.eq.s32.totalorder %s33, 7
      %p141 = por %p139, %p140
      %p142 = scmp.ne.s32.totalorder %s131, %s132
      %p143 = scmp.eq.s32.totalorder %s33, 0
      %p144 = por %p142, %p143
      %p145 = scmp.ne.s32.totalorder %s131, %s132
      %p146 = scmp.eq.s32.totalorder %s34, 7
      %p147 = por %p145, %p146
      %p149 = scmp.ne.s32.totalorder %s132, %s148
      %p150 = scmp.eq.s32.totalorder %s34, 0
      %p151 = por %p149, %p150
      %s152 = ssub.s32 %s36, %s43
      %p153 = scmp.eq.s32.totalorder %s152, 0
      %s155 = sadd.s32 %s154, 1
      %s156 = scalar_select %p153, %s154, %s155
      %p159 = pneg %p153
      %p160 = scmp.eq.s32.totalorder %s28, 7
      %p161 = por %p159, %p160
      %p162 = scmp.ne.s32.totalorder %s154, %s157
      %p163 = scmp.eq.s32.totalorder %s28, 0
      %p164 = por %p162, %p163
      %p165 = scmp.ne.s32.totalorder %s154, %s157
      %p166 = scmp.eq.s32.totalorder %s33, 7
      %p167 = por %p165, %p166
      %p168 = scmp.ne.s32.totalorder %s157, %s158
      %p169 = scmp.eq.s32.totalorder %s33, 0
      %p170 = por %p168, %p169
      %p171 = scmp.ne.s32.totalorder %s157, %s158
      %p172 = scmp.eq.s32.totalorder %s34, 7
      %p173 = por %p171, %p172
      %p175 = scmp.ne.s32.totalorder %s158, %s174
      %p176 = scmp.eq.s32.totalorder %s34, 0
      %p177 = por %p175, %p176
      %s178 = ssub.s32 %s36, %s43
      %p179 = scmp.eq.s32.totalorder %s178, 0
      %s181 = sadd.s32 %s180, 1
      %s182 = scalar_select %p179, %s180, %s181
      %p185 = pneg %p179
      %p186 = scmp.eq.s32.totalorder %s28, 7
      %p187 = por %p185, %p186
      %p188 = scmp.ne.s32.totalorder %s180, %s183
      %p189 = scmp.eq.s32.totalorder %s28, 0
      %p190 = por %p188, %p189
      %p191 = scmp.ne.s32.totalorder %s180, %s183
      %p192 = scmp.eq.s32.totalorder %s33, 7
      %p193 = por %p191, %p192
      %p194 = scmp.ne.s32.totalorder %s183, %s184
      %p195 = scmp.eq.s32.totalorder %s33, 0
      %p196 = por %p194, %p195
      %p197 = scmp.ne.s32.totalorder %s183, %s184
      %p198 = scmp.eq.s32.totalorder %s34, 7
      %p199 = por %p197, %p198
      %p201 = scmp.ne.s32.totalorder %s184, %s200
      %p202 = scmp.eq.s32.totalorder %s34, 0
      %p203 = por %p201, %p202
      %s205 = sadd.s32 %s204, 1
      %p208 = scmp.eq.s32.totalorder %s28, 7
      %p209 = scmp.ne.s32.totalorder %s204, %s206
      %p210 = scmp.eq.s32.totalorder %s28, 0
      %p211 = por %p209, %p210
      %p212 = scmp.ne.s32.totalorder %s204, %s206
      %p213 = scmp.eq.s32.totalorder %s33, 7
      %p214 = por %p212, %p213
      %p215 = scmp.ne.s32.totalorder %s206, %s207
      %p216 = scmp.eq.s32.totalorder %s33, 0
      %p217 = por %p215, %p216
      %p218 = scmp.ne.s32.totalorder %s206, %s207
      %p219 = scmp.eq.s32.totalorder %s34, 7
      %p220 = por %p218, %p219
      %p222 = scmp.ne.s32.totalorder %s207, %s221
      %p223 = scmp.eq.s32.totalorder %s34, 0
      %p224 = por %p222, %p223
      %s225 = ssub.s32 %s35, %s47
      %p226 = scmp.eq.s32.totalorder %s225, 0
      %s228 = sadd.s32 %s227, 1
      %s229 = scalar_select %p226, %s227, %s228
      %p232 = pneg %p226
      %p233 = scmp.eq.s32.totalorder %s28, 7
      %p234 = por %p232, %p233
      %p235 = scmp.ne.s32.totalorder %s227, %s230
      %p236 = scmp.eq.s32.totalorder %s28, 0
      %p237 = por %p235, %p236
      %p238 = scmp.ne.s32.totalorder %s227, %s230
      %p239 = scmp.eq.s32.totalorder %s33, 7
      %p240 = por %p238, %p239
      %p241 = scmp.ne.s32.totalorder %s230, %s231
      %p242 = scmp.eq.s32.totalorder %s33, 0
      %p243 = por %p241, %p242
      %p244 = scmp.ne.s32.totalorder %s230, %s231
      %p245 = scmp.eq.s32.totalorder %s34, 7
      %p246 = por %p244, %p245
      %p248 = scmp.ne.s32.totalorder %s231, %s247
      %p249 = scmp.eq.s32.totalorder %s34, 0
      %p250 = por %p248, %p249
      %p251 = scmp.le.s32.totalorder 1, %s28
      %p252 = scmp.lt.s32.totalorder %s28, 9
      %p253 = pnand %p251, %p252
      %p254 = pneg %p253
      // Predicated region
      $region9: #{tpu_custom_call.1} parent=5 // pred_check
        _
      $region10: #{tpu_custom_call.1} parent=5 // pred_check_branch
        %256 = sbr.rel (%p253) target = $region12
      $region11: #{tpu_custom_call.1} parent=5 // pred_region
        %s257 = ssub.s32 %s28, 1
        // Predicated region
        $region13: #{tpu_custom_call.1} parent=11 // pred_check
          %p258 = pneg %p217
        $region14: #{tpu_custom_call.1} parent=11 // pred_check_branch
          %260 = sbr.rel (%p258) target = $region16
        $region15: #{tpu_custom_call.1} parent=11 // pred_region
          %s262 = ssub.s32 32, 32
          %263 = vsyncadd [#allocation13], %s262
          %s265 = sshll.u32 [#allocation14], 4
          %s266 = int_to_ptr.vmem [resolvable:$true] %s265
          %268 = dma.hbm_to_vmem [thread:$0]  %s6, 32, %s266, [#allocation13]
        $region16: #{tpu_custom_call.1} parent=11 // pred_fallthru
          _
      $region12: #{tpu_custom_call.1} parent=5 // pred_fallthru
        _
      %p269 = scmp.lt.s32.totalorder %s28, 8
      // Predicated region
      $region17: #{tpu_custom_call.1} parent=5 // pred_check
        %p270 = pneg %p269
      $region18: #{tpu_custom_call.1} parent=5 // pred_check_branch
        %272 = sbr.rel (%p270) target = $region20
      $region19: #{tpu_custom_call.1} parent=5 // pred_region
        // Predicated region
        $region21: #{tpu_custom_call.1} parent=19 // pred_check
          %p273 = pneg %p60
        $region22: #{tpu_custom_call.1} parent=19 // pred_check_branch
          %275 = sbr.rel (%p273) target = $region24
        $region23: #{tpu_custom_call.1} parent=19 // pred_region
          %s276 = sand.u32 %s50, 1
          %s277 = scalar_lea.sflag [#allocation4], %s276
          %s278 = sand.u32 %s50, 1
          %s279 = smul.addr %s278, 16
          %s280 = scalar_lea.vmem [#allocation3], %s279
          %s282 = ssub.s32 256, 256
          %283 = vsyncadd %s277, %s282
          %s284 = smul.addr %s35, 2
          %s285 = smul.addr %s284, 128
          %s286 = scalar_lea.hbm %s0, %s285
          %s288 = sshll.u32 %s280, 4
          %s289 = int_to_ptr.vmem [resolvable:$true] %s288
          %291 = dma.hbm_to_vmem [thread:$0]  %s286, 256, %s289, %s277
        $region24: #{tpu_custom_call.1} parent=19 // pred_fallthru
          _
        // Predicated region
        $region25: #{tpu_custom_call.1} parent=19 // pred_check
          %p292 = pneg %p86
        $region26: #{tpu_custom_call.1} parent=19 // pred_check_branch
          %294 = sbr.rel (%p292) target = $region28
        $region27: #{tpu_custom_call.1} parent=19 // pred_region
          %s295 = sand.u32 %s28, 1
          %s296 = scalar_lea.sflag [#allocation7], %s295
          %s297 = sand.u32 %s76, 1
          %s298 = smul.addr %s297, 16
          %s299 = scalar_lea.vmem [#allocation6], %s298
          %s301 = ssub.s32 256, 256
          %302 = vsyncadd %s296, %s301
          %s303 = smul.addr %s35, 2
          %s304 = smul.addr %s303, 128
          %s305 = scalar_lea.hbm %s1, %s304
          %s307 = sshll.u32 %s299, 4
          %s308 = int_to_ptr.vmem [resolvable:$true] %s307
          %310 = dma.hbm_to_vmem [thread:$0]  %s305, 256, %s308, %s296
        $region28: #{tpu_custom_call.1} parent=19 // pred_fallthru
          _
        // Predicated region
        $region29: #{tpu_custom_call.1} parent=19 // pred_check
          %p311 = pneg %p112
        $region30: #{tpu_custom_call.1} parent=19 // pred_check_branch
          %313 = sbr.rel (%p311) target = $region32
        $region31: #{tpu_custom_call.1} parent=19 // pred_region
          %s314 = sand.u32 %s28, 1
          %s315 = scalar_lea.sflag [#allocation7], %s314
          %s316 = sand.u32 %s102, 1
          %s317 = smul.addr %s316, 16
          %s318 = scalar_lea.vmem [#allocation8], %s317
          %s320 = ssub.s32 256, 256
          %321 = vsyncadd %s315, %s320
          %s322 = smul.addr %s35, 2
          %s323 = smul.addr %s322, 128
          %s324 = scalar_lea.hbm %s2, %s323
          %s326 = sshll.u32 %s318, 4
          %s327 = int_to_ptr.vmem [resolvable:$true] %s326
          %329 = dma.hbm_to_vmem [thread:$0]  %s324, 256, %s327, %s315
        $region32: #{tpu_custom_call.1} parent=19 // pred_fallthru
          _
        // Predicated region
        $region33: #{tpu_custom_call.1} parent=19 // pred_check
          %p330 = pneg %p138
        $region34: #{tpu_custom_call.1} parent=19 // pred_check_branch
          %332 = sbr.rel (%p330) target = $region36
        $region35: #{tpu_custom_call.1} parent=19 // pred_region
          %s333 = sand.u32 %s28, 1
          %s334 = scalar_lea.sflag [#allocation10], %s333
          %s335 = sand.u32 %s128, 1
          %s336 = smul.addr %s335, 768
          %s337 = scalar_lea.vmem [#allocation9], %s336
          %s339 = ssub.s32 12288, 12288
          %340 = vsyncadd %s334, %s339
          %s341 = smul.addr %s36, 96
          %s342 = smul.addr %s341, 128
          %s343 = scalar_lea.hbm %s3, %s342
          %s344 = sshll.u32 %s337, 4
          %s345 = int_to_ptr.vmem [resolvable:$true] %s344
          %350 = dma.hbm_to_vmem [thread:$0]  %s343, 12288, %s345, %s334, 128, 128, 8
        $region36: #{tpu_custom_call.1} parent=19 // pred_fallthru
          _
        // Predicated region
        $region37: #{tpu_custom_call.1} parent=19 // pred_check
          %p351 = pneg %p164
        $region38: #{tpu_custom_call.1} parent=19 // pred_check_branch
          %353 = sbr.rel (%p351) target = $region40
        $region39: #{tpu_custom_call.1} parent=19 // pred_region
          %s354 = sand.u32 %s28, 1
          %s355 = scalar_lea.sflag [#allocation10], %s354
          %s356 = sand.u32 %s154, 1
          %s357 = smul.addr %s356, 3
          %s358 = scalar_lea.vmem [#allocation11], %s357
          %s360 = ssub.s32 48, 48
          %361 = vsyncadd %s355, %s360
          %s362 = smul.addr %s36, 3
          %s363 = smul.addr %s362, 16
          %s364 = scalar_lea.hbm %s4, %s363
          %s365 = sshll.u32 %s358, 4
          %s366 = int_to_ptr.vmem [resolvable:$true] %s365
          %371 = dma.hbm_to_vmem [thread:$0]  %s364, 48, %s366, %s355, 16, 16, 1
        $region40: #{tpu_custom_call.1} parent=19 // pred_fallthru
          _
        // Predicated region
        $region41: #{tpu_custom_call.1} parent=19 // pred_check
          %p372 = pneg %p190
        $region42: #{tpu_custom_call.1} parent=19 // pred_check_branch
          %374 = sbr.rel (%p372) target = $region44
        $region43: #{tpu_custom_call.1} parent=19 // pred_region
          %s375 = sand.u32 %s28, 1
          %s376 = scalar_lea.sflag [#allocation13], %s375
          %s377 = sand.u32 %s180, 1
          %s378 = smul.addr %s377, 128
          %s379 = scalar_lea.vmem [#allocation12], %s378
          %s381 = ssub.s32 2048, 2048
          %382 = vsyncadd %s376, %s381
          %s383 = smul.addr %s36, 16
          %s384 = smul.addr %s383, 128
          %s385 = scalar_lea.hbm %s5, %s384
          %s386 = sshll.u32 %s379, 4
          %s387 = int_to_ptr.vmem [resolvable:$true] %s386
          %392 = dma.hbm_to_vmem [thread:$0]  %s385, 2048, %s387, %s376, 256, 256, 16
        $region44: #{tpu_custom_call.1} parent=19 // pred_fallthru
          _
      $region20: #{tpu_custom_call.1} parent=5 // pred_fallthru
        _
      %p393 = scmp.le.s32.totalorder 1, %s28
      %p394 = scmp.lt.s32.totalorder %s28, 9
      %p395 = pnand %p393, %p394
      %p396 = pneg %p395
      // Predicated region
      $region45: #{tpu_custom_call.1} parent=5 // pred_check
        _
      $region46: #{tpu_custom_call.1} parent=5 // pred_check_branch
        %398 = sbr.rel (%p395) target = $region48
      $region47: #{tpu_custom_call.1} parent=5 // pred_region
        %s399 = ssub.s32 %s28, 1
        %s400 = sand.u32 %s53, 1
        %s401 = scalar_lea.sflag [#allocation4], %s400
        %s402 = sand.u32 %s53, 1
        %s403 = smul.addr %s402, 16
        %s404 = scalar_lea.vmem [#allocation3], %s403
        // Predicated region
        $region49: #{tpu_custom_call.1} parent=47 // pred_check
          %p405 = pneg %p66
        $region50: #{tpu_custom_call.1} parent=47 // pred_check_branch
          %407 = sbr.rel (%p405) target = $region52
        $region51: #{tpu_custom_call.1} parent=47 // pred_region
          %408 = dma.done %s401, 256
        $region52: #{tpu_custom_call.1} parent=47 // pred_fallthru
          _
        %s409 = sand.u32 %s33, 1
        %s410 = scalar_lea.sflag [#allocation7], %s409
        %s411 = sand.u32 %s79, 1
        %s412 = smul.addr %s411, 16
        %s413 = scalar_lea.vmem [#allocation6], %s412
        // Predicated region
        $region53: #{tpu_custom_call.1} parent=47 // pred_check
          %p414 = pneg %p92
        $region54: #{tpu_custom_call.1} parent=47 // pred_check_branch
          %416 = sbr.rel (%p414) target = $region56
        $region55: #{tpu_custom_call.1} parent=47 // pred_region
          %417 = dma.done %s410, 256
        $region56: #{tpu_custom_call.1} parent=47 // pred_fallthru
          _
        %s418 = sand.u32 %s33, 1
        %s419 = scalar_lea.sflag [#allocation7], %s418
        %s420 = sand.u32 %s105, 1
        %s421 = smul.addr %s420, 16
        %s422 = scalar_lea.vmem [#allocation8], %s421
        // Predicated region
        $region57: #{tpu_custom_call.1} parent=47 // pred_check
          %p423 = pneg %p118
        $region58: #{tpu_custom_call.1} parent=47 // pred_check_branch
          %425 = sbr.rel (%p423) target = $region60
        $region59: #{tpu_custom_call.1} parent=47 // pred_region
          %426 = dma.done %s419, 256
        $region60: #{tpu_custom_call.1} parent=47 // pred_fallthru
          _
        %s427 = sand.u32 %s33, 1
        %s428 = scalar_lea.sflag [#allocation10], %s427
        %s429 = sand.u32 %s131, 1
        %s430 = smul.addr %s429, 768
        %s431 = scalar_lea.vmem [#allocation9], %s430
        // Predicated region
        $region61: #{tpu_custom_call.1} parent=47 // pred_check
          %p432 = pneg %p144
        $region62: #{tpu_custom_call.1} parent=47 // pred_check_branch
          %434 = sbr.rel (%p432) target = $region64
        $region63: #{tpu_custom_call.1} parent=47 // pred_region
          %435 = dma.done %s428, 12288
        $region64: #{tpu_custom_call.1} parent=47 // pred_fallthru
          _
        %s436 = sand.u32 %s33, 1
        %s437 = scalar_lea.sflag [#allocation10], %s436
        %s438 = sand.u32 %s157, 1
        %s439 = smul.addr %s438, 3
        %s440 = scalar_lea.vmem [#allocation11], %s439
        // Predicated region
        $region65: #{tpu_custom_call.1} parent=47 // pred_check
          %p441 = pneg %p170
        $region66: #{tpu_custom_call.1} parent=47 // pred_check_branch
          %443 = sbr.rel (%p441) target = $region68
        $region67: #{tpu_custom_call.1} parent=47 // pred_region
          %444 = dma.done %s437, 48
        $region68: #{tpu_custom_call.1} parent=47 // pred_fallthru
          _
        %s445 = sand.u32 %s33, 1
        %s446 = scalar_lea.sflag [#allocation13], %s445
        %s447 = sand.u32 %s183, 1
        %s448 = smul.addr %s447, 128
        %s449 = scalar_lea.vmem [#allocation12], %s448
        // Predicated region
        $region69: #{tpu_custom_call.1} parent=47 // pred_check
          %p450 = pneg %p196
        $region70: #{tpu_custom_call.1} parent=47 // pred_check_branch
          %452 = sbr.rel (%p450) target = $region72
        $region71: #{tpu_custom_call.1} parent=47 // pred_region
          %453 = dma.done %s446, 2048
        $region72: #{tpu_custom_call.1} parent=47 // pred_fallthru
          _
        // Predicated region
        $region73: #{tpu_custom_call.1} parent=47 // pred_check
          %p454 = pneg %p217
        $region74: #{tpu_custom_call.1} parent=47 // pred_check_branch
          %456 = sbr.rel (%p454) target = $region76
        $region75: #{tpu_custom_call.1} parent=47 // pred_region
          %457 = dma.done [#allocation13], 32
        $region76: #{tpu_custom_call.1} parent=47 // pred_fallthru
          _
        %s458 = sand.u32 %s53, 1
        %s459 = scalar_lea.sflag [#allocation4], %s458
        %s460 = sand.u32 %s53, 1
        %s461 = smul.addr %s460, 16
        %s462 = scalar_lea.vmem [#allocation3], %s461
        %p463 = pneg %p66
        %p464 = pneg %p63
        %s465 = sand.u32 %s33, 1
        %s466 = scalar_lea.sflag [#allocation7], %s465
        %s467 = sand.u32 %s79, 1
        %s468 = smul.addr %s467, 16
        %s469 = scalar_lea.vmem [#allocation6], %s468
        %p470 = pneg %p92
        %p471 = pneg %p89
        %s472 = sand.u32 %s33, 1
        %s473 = scalar_lea.sflag [#allocation7], %s472
        %s474 = sand.u32 %s105, 1
        %s475 = smul.addr %s474, 16
        %s476 = scalar_lea.vmem [#allocation8], %s475
        %p477 = pneg %p118
        %p478 = pneg %p115
        %s479 = sand.u32 %s33, 1
        %s480 = scalar_lea.sflag [#allocation10], %s479
        %s481 = sand.u32 %s131, 1
        %s482 = smul.addr %s481, 768
        %s483 = scalar_lea.vmem [#allocation9], %s482
        %p484 = pneg %p144
        %p485 = pneg %p141
        %s486 = sand.u32 %s33, 1
        %s487 = scalar_lea.sflag [#allocation10], %s486
        %s488 = sand.u32 %s157, 1
        %s489 = smul.addr %s488, 3
        %s490 = scalar_lea.vmem [#allocation11], %s489
        %p491 = pneg %p170
        %p492 = pneg %p167
        %s493 = sand.u32 %s33, 1
        %s494 = scalar_lea.sflag [#allocation13], %s493
        %s495 = sand.u32 %s183, 1
        %s496 = smul.addr %s495, 128
        %s497 = scalar_lea.vmem [#allocation12], %s496
        %p498 = pneg %p196
        %p499 = pneg %p193
        %p500 = pneg %p217
        %p501 = pneg %p214
        %p502 = pneg %p243
        %p503 = pneg %p240
        %s504 = sand.u32 %s230, 1
        %s505 = scalar_lea.sflag [#allocation5], %s504
        %s506 = sand.u32 %s230, 1
        %s507 = smul.addr %s506, 16
        %s508 = scalar_lea.vmem [#allocation15], %s507
        %p509 = scmp.eq.s32.totalorder %s38, 0
        // Predicated region
        $region77: #{tpu_custom_call.1} parent=47 // pred_check
          %p510 = pneg %p509
        $region78: #{tpu_custom_call.1} parent=47 // pred_check_branch
          %512 = sbr.rel (%p510) target = $region80
        $region79: #{tpu_custom_call.1} parent=47 // pred_region
          %513 = vst [vmem:[#allocation2] sm:$0xff] 0.0
          %514 = vst [vmem:[#allocation2 + $0x8] sm:$0xff] 0.0
        $region80: #{tpu_custom_call.1} parent=47 // pred_fallthru
          _
        %v515 = vld [vmem:[%s404] sm:$0xff]
        %v516 = vld [vmem:[%s404 + $0x8] sm:$0xff]
        %v517 = vld [vmem:[%s413] sm:$0xff]
        %v518 = vld [vmem:[%s413 + $0x8] sm:$0xff]
        %v519 = vld [vmem:[%s422] sm:$0xff]
        %v520 = vld [vmem:[%s422 + $0x8] sm:$0xff]
        %v521 = vld [vmem:[%s431] sm:$0xff]
        %v522 = vld [vmem:[%s431 + $0x8] sm:$0xff]
        %v523 = vld [vmem:[%s431 + $0x10] sm:$0xff]
        %v524 = vld [vmem:[%s431 + $0x18] sm:$0xff]
        %v525 = vld [vmem:[%s431 + $0x20] sm:$0xff]
        %v526 = vld [vmem:[%s431 + $0x28] sm:$0xff]
        %v527 = vld [vmem:[%s431 + $0x30] sm:$0xff]
        %v528 = vld [vmem:[%s431 + $0x38] sm:$0xff]
        %v529 = vld [vmem:[%s431 + $0x40] sm:$0xff]
        %v530 = vld [vmem:[%s431 + $0x48] sm:$0xff]
        %v531 = vld [vmem:[%s431 + $0x50] sm:$0xff]
        %v532 = vld [vmem:[%s431 + $0x58] sm:$0xff]
        %v533 = vld [vmem:[%s431 + $0x60] sm:$0xff]
        %v534 = vld [vmem:[%s431 + $0x68] sm:$0xff]
        %v535 = vld [vmem:[%s431 + $0x70] sm:$0xff]
        %v536 = vld [vmem:[%s431 + $0x78] sm:$0xff]
        %v537 = vld [vmem:[%s431 + $0x80] sm:$0xff]
        %v538 = vld [vmem:[%s431 + $0x88] sm:$0xff]
        %v539 = vld [vmem:[%s431 + $0x90] sm:$0xff]
        %v540 = vld [vmem:[%s431 + $0x98] sm:$0xff]
        %v541 = vld [vmem:[%s431 + $0xa0] sm:$0xff]
        %v542 = vld [vmem:[%s431 + $0xa8] sm:$0xff]
        %v543 = vld [vmem:[%s431 + $0xb0] sm:$0xff]
        %v544 = vld [vmem:[%s431 + $0xb8] sm:$0xff]
        %v545 = vld [vmem:[%s431 + $0xc0] sm:$0xff]
        %v546 = vld [vmem:[%s431 + $0xc8] sm:$0xff]
        %v547 = vld [vmem:[%s431 + $0xd0] sm:$0xff]
        %v548 = vld [vmem:[%s431 + $0xd8] sm:$0xff]
        %v549 = vld [vmem:[%s431 + $0xe0] sm:$0xff]
        %v550 = vld [vmem:[%s431 + $0xe8] sm:$0xff]
        %v551 = vld [vmem:[%s431 + $0xf0] sm:$0xff]
        %v552 = vld [vmem:[%s431 + $0xf8] sm:$0xff]
        %v553 = vld [vmem:[%s431 + $0x100] sm:$0xff]
        %v554 = vld [vmem:[%s431 + $0x108] sm:$0xff]
        %v555 = vld [vmem:[%s431 + $0x110] sm:$0xff]
        %v556 = vld [vmem:[%s431 + $0x118] sm:$0xff]
        %v557 = vld [vmem:[%s431 + $0x120] sm:$0xff]
        %v558 = vld [vmem:[%s431 + $0x128] sm:$0xff]
        %v559 = vld [vmem:[%s431 + $0x130] sm:$0xff]
        %v560 = vld [vmem:[%s431 + $0x138] sm:$0xff]
        %v561 = vld [vmem:[%s431 + $0x140] sm:$0xff]
        %v562 = vld [vmem:[%s431 + $0x148] sm:$0xff]
        %v563 = vld [vmem:[%s431 + $0x150] sm:$0xff]
        %v564 = vld [vmem:[%s431 + $0x158] sm:$0xff]
        %v565 = vld [vmem:[%s431 + $0x160] sm:$0xff]
        %v566 = vld [vmem:[%s431 + $0x168] sm:$0xff]
        %v567 = vld [vmem:[%s431 + $0x170] sm:$0xff]
        %v568 = vld [vmem:[%s431 + $0x178] sm:$0xff]
        %v569 = vld [vmem:[%s431 + $0x180] sm:$0xff]
        %v570 = vld [vmem:[%s431 + $0x188] sm:$0xff]
        %v571 = vld [vmem:[%s431 + $0x190] sm:$0xff]
        %v572 = vld [vmem:[%s431 + $0x198] sm:$0xff]
        %v573 = vld [vmem:[%s431 + $0x1a0] sm:$0xff]
        %v574 = vld [vmem:[%s431 + $0x1a8] sm:$0xff]
        %v575 = vld [vmem:[%s431 + $0x1b0] sm:$0xff]
        %v576 = vld [vmem:[%s431 + $0x1b8] sm:$0xff]
        %v577 = vld [vmem:[%s431 + $0x1c0] sm:$0xff]
        %v578 = vld [vmem:[%s431 + $0x1c8] sm:$0xff]
        %v579 = vld [vmem:[%s431 + $0x1d0] sm:$0xff]
        %v580 = vld [vmem:[%s431 + $0x1d8] sm:$0xff]
        %v581 = vld [vmem:[%s431 + $0x1e0] sm:$0xff]
        %v582 = vld [vmem:[%s431 + $0x1e8] sm:$0xff]
        %v583 = vld [vmem:[%s431 + $0x1f0] sm:$0xff]
        %v584 = vld [vmem:[%s431 + $0x1f8] sm:$0xff]
        %v585 = vld [vmem:[%s431 + $0x200] sm:$0xff]
        %v586 = vld [vmem:[%s431 + $0x208] sm:$0xff]
        %v587 = vld [vmem:[%s431 + $0x210] sm:$0xff]
        %v588 = vld [vmem:[%s431 + $0x218] sm:$0xff]
        %v589 = vld [vmem:[%s431 + $0x220] sm:$0xff]
        %v590 = vld [vmem:[%s431 + $0x228] sm:$0xff]
        %v591 = vld [vmem:[%s431 + $0x230] sm:$0xff]
        %v592 = vld [vmem:[%s431 + $0x238] sm:$0xff]
        %v593 = vld [vmem:[%s431 + $0x240] sm:$0xff]
        %v594 = vld [vmem:[%s431 + $0x248] sm:$0xff]
        %v595 = vld [vmem:[%s431 + $0x250] sm:$0xff]
        %v596 = vld [vmem:[%s431 + $0x258] sm:$0xff]
        %v597 = vld [vmem:[%s431 + $0x260] sm:$0xff]
        %v598 = vld [vmem:[%s431 + $0x268] sm:$0xff]
        %v599 = vld [vmem:[%s431 + $0x270] sm:$0xff]
        %v600 = vld [vmem:[%s431 + $0x278] sm:$0xff]
        %v601 = vld [vmem:[%s431 + $0x280] sm:$0xff]
        %v602 = vld [vmem:[%s431 + $0x288] sm:$0xff]
        %v603 = vld [vmem:[%s431 + $0x290] sm:$0xff]
        %v604 = vld [vmem:[%s431 + $0x298] sm:$0xff]
        %v605 = vld [vmem:[%s431 + $0x2a0] sm:$0xff]
        %v606 = vld [vmem:[%s431 + $0x2a8] sm:$0xff]
        %v607 = vld [vmem:[%s431 + $0x2b0] sm:$0xff]
        %v608 = vld [vmem:[%s431 + $0x2b8] sm:$0xff]
        %v609 = vld [vmem:[%s431 + $0x2c0] sm:$0xff]
        %v610 = vld [vmem:[%s431 + $0x2c8] sm:$0xff]
        %v611 = vld [vmem:[%s431 + $0x2d0] sm:$0xff]
        %v612 = vld [vmem:[%s431 + $0x2d8] sm:$0xff]
        %v613 = vld [vmem:[%s431 + $0x2e0] sm:$0xff]
        %v614 = vld [vmem:[%s431 + $0x2e8] sm:$0xff]
        %v615 = vld [vmem:[%s431 + $0x2f0] sm:$0xff]
        %v616 = vld [vmem:[%s431 + $0x2f8] sm:$0xff]
        %v617 = vld [vmem:[%s440] sm:$0x1]
        %v618 = vld [vmem:[%s440 + $0x1] sm:$0x1]
        %v619 = vld [vmem:[%s440 + $0x2] sm:$0x1]
        %v623 = vlaneseq
        %v624 = vshrl.u32 %v623, 7
        %v625 = vsub.s32 0, %v624
        %v626 = vrot.slane %v617, %v625
        %v627 = vlaneseq
        %v628 = vshrl.u32 %v627, 7
        %v629 = vsub.s32 0, %v628
        %v630 = vrot.slane %v618, %v629
        %v631 = vlaneseq
        %v632 = vshrl.u32 %v631, 7
        %v633 = vsub.s32 0, %v632
        %v634 = vrot.slane %v619, %v633
        %638 = vmatprep.subr.mxu0 0.0
        %639 = vmatpush1.msra.mxu0 %v521
        %640 = vmatprep.subr.mxu0 0.0
        %641 = vmatpush1.msra.mxu0 %v522
        %642 = vmatprep.subr.mxu0 0.0
        %643 = vmatpush1.msra.mxu0 %v523
        %644 = vmatprep.subr.mxu0 0.0
        %645 = vmatpush1.msra.mxu0 %v524
        %646 = vmatprep.subr.mxu0 0.0
        %647 = vmatpush1.msra.mxu0 %v525
        %648 = vmatprep.subr.mxu0 0.0
        %649 = vmatpush1.msra.mxu0 %v526
        %650 = vmatprep.subr.mxu0 0.0
        %651 = vmatpush1.msra.mxu0 %v527
        %652 = vmatprep.subr.mxu0 0.0
        %653 = vmatpush1.msra.mxu0 %v528
        %654 = vmatprep.subr.mxu0 0.0
        %655 = vmatpush1.msra.mxu0 %v529
        %656 = vmatprep.subr.mxu0 0.0
        %657 = vmatpush1.msra.mxu0 %v530
        %658 = vmatprep.subr.mxu0 0.0
        %659 = vmatpush1.msra.mxu0 %v531
        %660 = vmatprep.subr.mxu0 0.0
        %661 = vmatpush1.msra.mxu0 %v532
        %662 = vmatprep.subr.mxu0 0.0
        %663 = vmatpush1.msra.mxu0 %v533
        %664 = vmatprep.subr.mxu0 0.0
        %665 = vmatpush1.msra.mxu0 %v534
        %666 = vmatprep.subr.mxu0 0.0
        %667 = vmatpush1.msra.mxu0 %v535
        %668 = vmatprep.subr.mxu0 0.0
        %669 = vmatpush1.msra.mxu0 %v536
        %670 = vmatprep.subr.mxu0 0.0
        %671 = vmatpush1.msra.mxu0 %v537
        %672 = vmatprep.subr.mxu0 0.0
        %673 = vmatpush1.msra.mxu0 %v538
        %674 = vmatprep.subr.mxu0 0.0
        %675 = vmatpush1.msra.mxu0 %v539
        %676 = vmatprep.subr.mxu0 0.0
        %677 = vmatpush1.msra.mxu0 %v540
        %678 = vmatprep.subr.mxu0 0.0
        %679 = vmatpush1.msra.mxu0 %v541
        %680 = vmatprep.subr.mxu0 0.0
        %681 = vmatpush1.msra.mxu0 %v542
        %682 = vmatprep.subr.mxu0 0.0
        %683 = vmatpush1.msra.mxu0 %v543
        %684 = vmatprep.subr.mxu0 0.0
        %685 = vmatpush1.msra.mxu0 %v544
        %686 = vmatprep.subr.mxu0 0.0
        %687 = vmatpush1.msra.mxu0 %v545
        %688 = vmatprep.subr.mxu0 0.0
        %689 = vmatpush1.msra.mxu0 %v546
        %690 = vmatprep.subr.mxu0 0.0
        %691 = vmatpush1.msra.mxu0 %v547
        %692 = vmatprep.subr.mxu0 0.0
        %693 = vmatpush1.msra.mxu0 %v548
        %694 = vmatprep.subr.mxu0 0.0
        %695 = vmatpush1.msra.mxu0 %v549
        %696 = vmatprep.subr.mxu0 0.0
        %697 = vmatpush1.msra.mxu0 %v550
        %698 = vmatprep.subr.mxu0 0.0
        %699 = vmatpush1.msra.mxu0 %v551
        %700 = vmatprep.subr.mxu0 0.0
        %701 = vmatpush1.msra.mxu0 %v552
        %702 = vmatprep.mubr.f32.mxu0 %v516
        %703 = vmatmul.mubr.f32.gmra.mrb[0].mxu0 %v515
        %v704 = vpop.f32.mrb[0].mxu0
        %v705 = vadd.f32 %v626, %v704
        %v706 = vpop.f32.mrb[0].mxu0
        %707 = vdwg.mxu0
        %708 = vmatprep.subr.mxu0 0.0
        %709 = vmatpush1.msra.mxu0 %v553
        %710 = vmatprep.subr.mxu0 0.0
        %711 = vmatpush1.msra.mxu0 %v554
        %712 = vmatprep.subr.mxu0 0.0
        %713 = vmatpush1.msra.mxu0 %v555
        %714 = vmatprep.subr.mxu0 0.0
        %715 = vmatpush1.msra.mxu0 %v556
        %716 = vmatprep.subr.mxu0 0.0
        %717 = vmatpush1.msra.mxu0 %v557
        %718 = vmatprep.subr.mxu0 0.0
        %719 = vmatpush1.msra.mxu0 %v558
        %720 = vmatprep.subr.mxu0 0.0
        %721 = vmatpush1.msra.mxu0 %v559
        %722 = vmatprep.subr.mxu0 0.0
        %723 = vmatpush1.msra.mxu0 %v560
        %724 = vmatprep.subr.mxu0 0.0
        %725 = vmatpush1.msra.mxu0 %v561
        %726 = vmatprep.subr.mxu0 0.0
        %727 = vmatpush1.msra.mxu0 %v562
        %728 = vmatprep.subr.mxu0 0.0
        %729 = vmatpush1.msra.mxu0 %v563
        %730 = vmatprep.subr.mxu0 0.0
        %731 = vmatpush1.msra.mxu0 %v564
        %732 = vmatprep.subr.mxu0 0.0
        %733 = vmatpush1.msra.mxu0 %v565
        %734 = vmatprep.subr.mxu0 0.0
        %735 = vmatpush1.msra.mxu0 %v566
        %736 = vmatprep.subr.mxu0 0.0
        %737 = vmatpush1.msra.mxu0 %v567
        %738 = vmatprep.subr.mxu0 0.0
        %739 = vmatpush1.msra.mxu0 %v568
        %740 = vmatprep.subr.mxu0 0.0
        %741 = vmatpush1.msra.mxu0 %v569
        %742 = vmatprep.subr.mxu0 0.0
        %743 = vmatpush1.msra.mxu0 %v570
        %744 = vmatprep.subr.mxu0 0.0
        %745 = vmatpush1.msra.mxu0 %v571
        %746 = vmatprep.subr.mxu0 0.0
        %747 = vmatpush1.msra.mxu0 %v572
        %748 = vmatprep.subr.mxu0 0.0
        %749 = vmatpush1.msra.mxu0 %v573
        %750 = vmatprep.subr.mxu0 0.0
        %751 = vmatpush1.msra.mxu0 %v574
        %752 = vmatprep.subr.mxu0 0.0
        %753 = vmatpush1.msra.mxu0 %v575
        %754 = vmatprep.subr.mxu0 0.0
        %755 = vmatpush1.msra.mxu0 %v576
        %756 = vmatprep.subr.mxu0 0.0
        %757 = vmatpush1.msra.mxu0 %v577
        %758 = vmatprep.subr.mxu0 0.0
        %759 = vmatpush1.msra.mxu0 %v578
        %760 = vmatprep.subr.mxu0 0.0
        %761 = vmatpush1.msra.mxu0 %v579
        %762 = vmatprep.subr.mxu0 0.0
        %763 = vmatpush1.msra.mxu0 %v580
        %764 = vmatprep.subr.mxu0 0.0
        %765 = vmatpush1.msra.mxu0 %v581
        %766 = vmatprep.subr.mxu0 0.0
        %767 = vmatpush1.msra.mxu0 %v582
        %768 = vmatprep.subr.mxu0 0.0
        %769 = vmatpush1.msra.mxu0 %v583
        %770 = vmatprep.subr.mxu0 0.0
        %771 = vmatpush1.msra.mxu0 %v584
        %772 = vmatprep.mubr.f32.mxu0 %v518
        %773 = vmatmul.mubr.f32.gmra.mrb[0].mxu0 %v517
        %v774 = vpop.f32.mrb[0].mxu0
        %v775 = vadd.f32 %v630, %v774
        %v776 = vpop.f32.mrb[0].mxu0
        %777 = vdwg.mxu0
        %778 = vmatprep.subr.mxu0 0.0
        %779 = vmatpush1.msra.mxu0 %v585
        %780 = vmatprep.subr.mxu0 0.0
        %781 = vmatpush1.msra.mxu0 %v586
        %782 = vmatprep.subr.mxu0 0.0
        %783 = vmatpush1.msra.mxu0 %v587
        %784 = vmatprep.subr.mxu0 0.0
        %785 = vmatpush1.msra.mxu0 %v588
        %786 = vmatprep.subr.mxu0 0.0
        %787 = vmatpush1.msra.mxu0 %v589
        %788 = vmatprep.subr.mxu0 0.0
        %789 = vmatpush1.msra.mxu0 %v590
        %790 = vmatprep.subr.mxu0 0.0
        %791 = vmatpush1.msra.mxu0 %v591
        %792 = vmatprep.subr.mxu0 0.0
        %793 = vmatpush1.msra.mxu0 %v592
        %794 = vmatprep.subr.mxu0 0.0
        %795 = vmatpush1.msra.mxu0 %v593
        %796 = vmatprep.subr.mxu0 0.0
        %797 = vmatpush1.msra.mxu0 %v594
        %798 = vmatprep.subr.mxu0 0.0
        %799 = vmatpush1.msra.mxu0 %v595
        %800 = vmatprep.subr.mxu0 0.0
        %801 = vmatpush1.msra.mxu0 %v596
        %802 = vmatprep.subr.mxu0 0.0
        %803 = vmatpush1.msra.mxu0 %v597
        %804 = vmatprep.subr.mxu0 0.0
        %805 = vmatpush1.msra.mxu0 %v598
        %806 = vmatprep.subr.mxu0 0.0
        %807 = vmatpush1.msra.mxu0 %v599
        %808 = vmatprep.subr.mxu0 0.0
        %809 = vmatpush1.msra.mxu0 %v600
        %810 = vmatprep.subr.mxu0 0.0
        %811 = vmatpush1.msra.mxu0 %v601
        %812 = vmatprep.subr.mxu0 0.0
        %813 = vmatpush1.msra.mxu0 %v602
        %814 = vmatprep.subr.mxu0 0.0
        %815 = vmatpush1.msra.mxu0 %v603
        %816 = vmatprep.subr.mxu0 0.0
        %817 = vmatpush1.msra.mxu0 %v604
        %818 = vmatprep.subr.mxu0 0.0
        %819 = vmatpush1.msra.mxu0 %v605
        %820 = vmatprep.subr.mxu0 0.0
        %821 = vmatpush1.msra.mxu0 %v606
        %822 = vmatprep.subr.mxu0 0.0
        %823 = vmatpush1.msra.mxu0 %v607
        %824 = vmatprep.subr.mxu0 0.0
        %825 = vmatpush1.msra.mxu0 %v608
        %826 = vmatprep.subr.mxu0 0.0
        %827 = vmatpush1.msra.mxu0 %v609
        %828 = vmatprep.subr.mxu0 0.0
        %829 = vmatpush1.msra.mxu0 %v610
        %830 = vmatprep.subr.mxu0 0.0
        %831 = vmatpush1.msra.mxu0 %v611
        %832 = vmatprep.subr.mxu0 0.0
        %833 = vmatpush1.msra.mxu0 %v612
        %834 = vmatprep.subr.mxu0 0.0
        %835 = vmatpush1.msra.mxu0 %v613
        %836 = vmatprep.subr.mxu0 0.0
        %837 = vmatpush1.msra.mxu0 %v614
        %838 = vmatprep.subr.mxu0 0.0
        %839 = vmatpush1.msra.mxu0 %v615
        %840 = vmatprep.subr.mxu0 0.0
        %841 = vmatpush1.msra.mxu0 %v616
        %842 = vmatprep.mubr.f32.mxu0 %v520
        %843 = vmatmul.mubr.f32.gmra.mrb[0].mxu0 %v519
        %v844 = vpop.f32.mrb[0].mxu0
        %v845 = vadd.f32 %v634, %v844
        %v846 = vpop.f32.mrb[0].mxu0
        %847 = vdwg.mxu0
        %vm848 = vcmask 523264
        %v850 = vsel %vm848, %v705, 0
        %v853 = vsel %vm848, %v775, 0
        %855 = vmatprep.subr.mxu0 0.0
        %856 = vmatpush1.xpose.msra.mxu0 %v853
        %857 = vmatprep.subr.mxu0 0.0
        %858 = vmatpush1.xpose.msra.mxu0 0.0
        %859 = vmatprep.subr.mxu0 0.0
        %860 = vmatpush1.xpose.msra.mxu0 0.0
        %861 = vmatprep.subr.mxu0 0.0
        %862 = vmatpush1.xpose.msra.mxu0 0.0
        %863 = vmatprep.subr.mxu0 0.0
        %864 = vmatpush1.xpose.msra.mxu0 0.0
        %865 = vmatprep.subr.mxu0 0.0
        %866 = vmatpush1.xpose.msra.mxu0 0.0
        %867 = vmatprep.subr.mxu0 0.0
        %868 = vmatpush1.xpose.msra.mxu0 0.0
        %869 = vmatprep.subr.mxu0 0.0
        %870 = vmatpush1.xpose.msra.mxu0 0.0
        %871 = vmatprep.subr.mxu0 0.0
        %872 = vmatpush1.xpose.msra.mxu0 0.0
        %873 = vmatprep.subr.mxu0 0.0
        %874 = vmatpush1.xpose.msra.mxu0 0.0
        %875 = vmatprep.subr.mxu0 0.0
        %876 = vmatpush1.xpose.msra.mxu0 0.0
        %877 = vmatprep.subr.mxu0 0.0
        %878 = vmatpush1.xpose.msra.mxu0 0.0
        %879 = vmatprep.subr.mxu0 0.0
        %880 = vmatpush1.xpose.msra.mxu0 0.0
        %881 = vmatprep.subr.mxu0 0.0
        %882 = vmatpush1.xpose.msra.mxu0 0.0
        %883 = vmatprep.subr.mxu0 0.0
        %884 = vmatpush1.xpose.msra.mxu0 0.0
        %885 = vmatprep.subr.mxu0 0.0
        %886 = vmatpush1.xpose.msra.mxu0 0.0
        %887 = vmatprep.subr.mxu0 0.0
        %888 = vmatpush1.xpose.msra.mxu0 0.0
        %889 = vmatprep.subr.mxu0 0.0
        %890 = vmatpush1.xpose.msra.mxu0 0.0
        %891 = vmatprep.subr.mxu0 0.0
        %892 = vmatpush1.xpose.msra.mxu0 0.0
        %893 = vmatprep.subr.mxu0 0.0
        %894 = vmatpush1.xpose.msra.mxu0 0.0
        %895 = vmatprep.subr.mxu0 0.0
        %896 = vmatpush1.xpose.msra.mxu0 0.0
        %897 = vmatprep.subr.mxu0 0.0
        %898 = vmatpush1.xpose.msra.mxu0 0.0
        %899 = vmatprep.subr.mxu0 0.0
        %900 = vmatpush1.xpose.msra.mxu0 0.0
        %901 = vmatprep.subr.mxu0 0.0
        %902 = vmatpush1.xpose.msra.mxu0 0.0
        %903 = vmatprep.subr.mxu0 0.0
        %904 = vmatpush1.xpose.msra.mxu0 0.0
        %905 = vmatprep.subr.mxu0 0.0
        %906 = vmatpush1.xpose.msra.mxu0 0.0
        %907 = vmatprep.subr.mxu0 0.0
        %908 = vmatpush1.xpose.msra.mxu0 0.0
        %909 = vmatprep.subr.mxu0 0.0
        %910 = vmatpush1.xpose.msra.mxu0 0.0
        %911 = vmatprep.subr.mxu0 0.0
        %912 = vmatpush1.xpose.msra.mxu0 0.0
        %913 = vmatprep.subr.mxu0 0.0
        %914 = vmatpush1.xpose.msra.mxu0 0.0
        %915 = vmatprep.subr.mxu0 0.0
        %916 = vmatpush1.xpose.msra.mxu0 0.0
        %917 = vmatprep.subr.mxu0 0.0
        %918 = vmatpush1.xpose.msra.mxu0 0.0
        %919 = vmatprep.mubr.f32.mxu0 0.0
        %920 = vmatmul.mubr.f32.gmra.mrb[0].mxu0 %v850
        %v921 = vpop.f32.mrb[0].mxu0
        %v922 = vadd.f32 0.0, %v921
        %v923 = vpop.f32.mrb[0].mxu0
        %924 = vdwg.mxu0
        %v925 = vmul.f32 %v922, 0.125
        %vm926 = vcmask 64512
        %v927 = vsel %vm926, %v925, -inf
        %928 = vmax.xlane.f32.xlu0 %v927
        %v929 = vpop.xlane.xlu0 %928
        %v930 = vsub.f32 %v925, %v929
        %v931 = vmul.f32 %v930, 1.442695
        %v932 = vpow.pop %v931
        %v933 = vsel %vm926, %v932, 0.0
        %934 = vadd.xlane.f32.xlu0 %v933
        %v935 = vpop.xlane.xlu0 %934
        %v937 = vsel %vm926, %v932, 0
        %939 = vmatprep.subr.mxu0 0.0
        %940 = vmatpush1.msra.mxu0 %v845
        %941 = vmatprep.subr.mxu0 0.0
        %942 = vmatpush1.msra.mxu0 0.0
        %943 = vmatprep.subr.mxu0 0.0
        %944 = vmatpush1.msra.mxu0 0.0
        %945 = vmatprep.subr.mxu0 0.0
        %946 = vmatpush1.msra.mxu0 0.0
        %947 = vmatprep.subr.mxu0 0.0
        %948 = vmatpush1.msra.mxu0 0.0
        %949 = vmatprep.subr.mxu0 0.0
        %950 = vmatpush1.msra.mxu0 0.0
        %951 = vmatprep.subr.mxu0 0.0
        %952 = vmatpush1.msra.mxu0 0.0
        %953 = vmatprep.subr.mxu0 0.0
        %954 = vmatpush1.msra.mxu0 0.0
        %955 = vmatprep.subr.mxu0 0.0
        %956 = vmatpush1.msra.mxu0 0.0
        %957 = vmatprep.subr.mxu0 0.0
        %958 = vmatpush1.msra.mxu0 0.0
        %959 = vmatprep.subr.mxu0 0.0
        %960 = vmatpush1.msra.mxu0 0.0
        %961 = vmatprep.subr.mxu0 0.0
        %962 = vmatpush1.msra.mxu0 0.0
        %963 = vmatprep.subr.mxu0 0.0
        %964 = vmatpush1.msra.mxu0 0.0
        %965 = vmatprep.subr.mxu0 0.0
        %966 = vmatpush1.msra.mxu0 0.0
        %967 = vmatprep.subr.mxu0 0.0
        %968 = vmatpush1.msra.mxu0 0.0
        %969 = vmatprep.subr.mxu0 0.0
        %970 = vmatpush1.msra.mxu0 0.0
        %971 = vmatprep.subr.mxu0 0.0
        %972 = vmatpush1.msra.mxu0 0.0
        %973 = vmatprep.subr.mxu0 0.0
        %974 = vmatpush1.msra.mxu0 0.0
        %975 = vmatprep.subr.mxu0 0.0
        %976 = vmatpush1.msra.mxu0 0.0
        %977 = vmatprep.subr.mxu0 0.0
        %978 = vmatpush1.msra.mxu0 0.0
        %979 = vmatprep.subr.mxu0 0.0
        %980 = vmatpush1.msra.mxu0 0.0
        %981 = vmatprep.subr.mxu0 0.0
        %982 = vmatpush1.msra.mxu0 0.0
        %983 = vmatprep.subr.mxu0 0.0
        %984 = vmatpush1.msra.mxu0 0.0
        %985 = vmatprep.subr.mxu0 0.0
        %986 = vmatpush1.msra.mxu0 0.0
        %987 = vmatprep.subr.mxu0 0.0
        %988 = vmatpush1.msra.mxu0 0.0
        %989 = vmatprep.subr.mxu0 0.0
        %990 = vmatpush1.msra.mxu0 0.0
        %991 = vmatprep.subr.mxu0 0.0
        %992 = vmatpush1.msra.mxu0 0.0
        %993 = vmatprep.subr.mxu0 0.0
        %994 = vmatpush1.msra.mxu0 0.0
        %995 = vmatprep.subr.mxu0 0.0
        %996 = vmatpush1.msra.mxu0 0.0
        %997 = vmatprep.subr.mxu0 0.0
        %998 = vmatpush1.msra.mxu0 0.0
        %999 = vmatprep.subr.mxu0 0.0
        %1000 = vmatpush1.msra.mxu0 0.0
        %1001 = vmatprep.subr.mxu0 0.0
        %1002 = vmatpush1.msra.mxu0 0.0
        %1003 = vmatprep.mubr.f32.mxu0 0.0
        %1004 = vmatmul.mubr.f32.gmra.mrb[0].mxu0 %v937
        %v1005 = vpop.f32.mrb[0].mxu0
        %v1006 = vadd.f32 0.0, %v1005
        %v1007 = vpop.f32.mrb[0].mxu0
        %1008 = vdwg.mxu0
        %v1009 = vrcp.pop %v935
        %v1010 = vmul.f32 %v1006, %v1009
        %v1011 = vld [vmem:[#allocation2] sm:$0xff]
        %v1012 = vld [vmem:[#allocation2 + $0x8] sm:$0xff]
        %v1013 = vld [vmem:[%s449] sm:$0xff]
        %v1014 = vld [vmem:[%s449 + $0x8] sm:$0xff]
        %v1015 = vld [vmem:[%s449 + $0x10] sm:$0xff]
        %v1016 = vld [vmem:[%s449 + $0x18] sm:$0xff]
        %v1017 = vld [vmem:[%s449 + $0x20] sm:$0xff]
        %v1018 = vld [vmem:[%s449 + $0x28] sm:$0xff]
        %v1019 = vld [vmem:[%s449 + $0x30] sm:$0xff]
        %v1020 = vld [vmem:[%s449 + $0x38] sm:$0xff]
        %v1021 = vld [vmem:[%s449 + $0x40] sm:$0xff]
        %v1022 = vld [vmem:[%s449 + $0x48] sm:$0xff]
        %v1023 = vld [vmem:[%s449 + $0x50] sm:$0xff]
        %v1024 = vld [vmem:[%s449 + $0x58] sm:$0xff]
        %v1025 = vld [vmem:[%s449 + $0x60] sm:$0xff]
        %v1026 = vld [vmem:[%s449 + $0x68] sm:$0xff]
        %v1027 = vld [vmem:[%s449 + $0x70] sm:$0xff]
        %v1028 = vld [vmem:[%s449 + $0x78] sm:$0xff]
        %v1030 = vsel %vm848, %v1010, 0
        %1032 = vmatprep.subr.mxu0 %v1014
        %1033 = vmatpush1.msra.mxu0 %v1013
        %1034 = vmatprep.subr.mxu0 %v1016
        %1035 = vmatpush1.msra.mxu0 %v1015
        %1036 = vmatprep.subr.mxu0 %v1018
        %1037 = vmatpush1.msra.mxu0 %v1017
        %1038 = vmatprep.subr.mxu0 %v1020
        %1039 = vmatpush1.msra.mxu0 %v1019
        %1040 = vmatprep.subr.mxu0 %v1022
        %1041 = vmatpush1.msra.mxu0 %v1021
        %1042 = vmatprep.subr.mxu0 %v1024
        %1043 = vmatpush1.msra.mxu0 %v1023
        %1044 = vmatprep.subr.mxu0 %v1026
        %1045 = vmatpush1.msra.mxu0 %v1025
        %1046 = vmatprep.subr.mxu0 %v1028
        %1047 = vmatpush1.msra.mxu0 %v1027
        %1048 = vmatprep.subr.mxu0 0.0
        %1049 = vmatpush1.msra.mxu0 0.0
        %1050 = vmatprep.subr.mxu0 0.0
        %1051 = vmatpush1.msra.mxu0 0.0
        %1052 = vmatprep.subr.mxu0 0.0
        %1053 = vmatpush1.msra.mxu0 0.0
        %1054 = vmatprep.subr.mxu0 0.0
        %1055 = vmatpush1.msra.mxu0 0.0
        %1056 = vmatprep.subr.mxu0 0.0
        %1057 = vmatpush1.msra.mxu0 0.0
        %1058 = vmatprep.subr.mxu0 0.0
        %1059 = vmatpush1.msra.mxu0 0.0
        %1060 = vmatprep.subr.mxu0 0.0
        %1061 = vmatpush1.msra.mxu0 0.0
        %1062 = vmatprep.subr.mxu0 0.0
        %1063 = vmatpush1.msra.mxu0 0.0
        %1064 = vmatprep.subr.mxu0 0.0
        %1065 = vmatpush1.msra.mxu0 0.0
        %1066 = vmatprep.subr.mxu0 0.0
        %1067 = vmatpush1.msra.mxu0 0.0
        %1068 = vmatprep.subr.mxu0 0.0
        %1069 = vmatpush1.msra.mxu0 0.0
        %1070 = vmatprep.subr.mxu0 0.0
        %1071 = vmatpush1.msra.mxu0 0.0
        %1072 = vmatprep.subr.mxu0 0.0
        %1073 = vmatpush1.msra.mxu0 0.0
        %1074 = vmatprep.subr.mxu0 0.0
        %1075 = vmatpush1.msra.mxu0 0.0
        %1076 = vmatprep.subr.mxu0 0.0
        %1077 = vmatpush1.msra.mxu0 0.0
        %1078 = vmatprep.subr.mxu0 0.0
        %1079 = vmatpush1.msra.mxu0 0.0
        %1080 = vmatprep.subr.mxu0 0.0
        %1081 = vmatpush1.msra.mxu0 0.0
        %1082 = vmatprep.subr.mxu0 0.0
        %1083 = vmatpush1.msra.mxu0 0.0
        %1084 = vmatprep.subr.mxu0 0.0
        %1085 = vmatpush1.msra.mxu0 0.0
        %1086 = vmatprep.subr.mxu0 0.0
        %1087 = vmatpush1.msra.mxu0 0.0
        %1088 = vmatprep.subr.mxu0 0.0
        %1089 = vmatpush1.msra.mxu0 0.0
        %1090 = vmatprep.subr.mxu0 0.0
        %1091 = vmatpush1.msra.mxu0 0.0
        %1092 = vmatprep.subr.mxu0 0.0
        %1093 = vmatpush1.msra.mxu0 0.0
        %1094 = vmatprep.subr.mxu0 0.0
        %1095 = vmatpush1.msra.mxu0 0.0
        %1096 = vmatprep.mubr.f32.mxu0 0.0
        %1097 = vmatmul.mubr.f32.gmra.mrb[0].mxu0 %v1030
        %v1098 = vpop.f32.mrb[0].mxu0
        %v1099 = vadd.f32 0.0, %v1098
        %v1100 = vpop.f32.mrb[0].mxu0
        %v1101 = vadd.f32 0.0, %v1100
        %1102 = vdwg.mxu0
        %v1103 = vadd.f32 %v1011, %v1099
        %v1104 = vadd.f32 %v1012, %v1101
        %1105 = vst [vmem:[#allocation2] sm:$0xff] %v1103
        %1106 = vst [vmem:[#allocation2 + $0x8] sm:$0xff] %v1104
        %p1107 = scmp.eq.s32.totalorder %s38, 3
        // Predicated region
        $region81: #{tpu_custom_call.1} parent=47 // pred_check
          %p1108 = pneg %p1107
        $region82: #{tpu_custom_call.1} parent=47 // pred_check_branch
          %1110 = sbr.rel (%p1108) target = $region84
        $region83: #{tpu_custom_call.1} parent=47 // pred_region
          %v1111 = vld [vmem:[#allocation2] sm:$0xff]
          %v1112 = vld [vmem:[#allocation2 + $0x8] sm:$0xff]
          %v1113 = vld [vmem:[#allocation14] sm:$0x3]
          %v1115 = vlaneseq
          %v1116 = vshrl.u32 %v1115, 7
          %v1117 = vsub.s32 0, %v1116
          %v1118 = vrot.slane %v1113, %v1117
          %v1119 = vlaneseq
          %v1120 = vshrl.u32 %v1119, 7
          %v1121 = vsub.s32 1, %v1120
          %v1122 = vrot.slane %v1113, %v1121
          %v1125 = vadd.f32 %v1111, %v1118
          %v1126 = vadd.f32 %v1112, %v1122
          %1127 = vst [vmem:[%s508] sm:$0xff] %v1125
          %1128 = vst [vmem:[%s508 + $0x8] sm:$0xff] %v1126
        $region84: #{tpu_custom_call.1} parent=47 // pred_fallthru
          _
        %s1129 = sand.u32 %s230, 1
        %s1130 = scalar_lea.sflag [#allocation5], %s1129
        %s1131 = sand.u32 %s230, 1
        %s1132 = smul.addr %s1131, 16
        %s1133 = scalar_lea.vmem [#allocation15], %s1132
        // Predicated region
        $region85: #{tpu_custom_call.1} parent=47 // pred_check
          %p1134 = pneg %p240
        $region86: #{tpu_custom_call.1} parent=47 // pred_check_branch
          %1136 = sbr.rel (%p1134) target = $region88
        $region87: #{tpu_custom_call.1} parent=47 // pred_region
          %s1138 = ssub.s32 256, 256
          %1139 = vsyncadd %s1130, %s1138
          %s1140 = smul.addr %s37, 2
          %s1141 = smul.addr %s1140, 128
          %s1142 = scalar_lea.hbm %s7, %s1141
          %s1144 = sshll.u32 %s1133, 4
          %s1145 = int_to_ptr.vmem [resolvable:$true] %s1144
          %1147 = dma.vmem_to_hbm [thread:$0]  %s1145, 256, %s1142, %s1130
        $region88: #{tpu_custom_call.1} parent=47 // pred_fallthru
          _
      $region48: #{tpu_custom_call.1} parent=5 // pred_fallthru
        _
      %p1148 = scmp.le.s32.totalorder 2, %s28
      // Predicated region
      $region89: #{tpu_custom_call.1} parent=5 // pred_check
        %p1149 = pneg %p1148
      $region90: #{tpu_custom_call.1} parent=5 // pred_check_branch
        %1151 = sbr.rel (%p1149) target = $region92
      $region91: #{tpu_custom_call.1} parent=5 // pred_region
        %s1152 = ssub.s32 %s28, 2
        // Predicated region
        $region93: #{tpu_custom_call.1} parent=91 // pred_check
          %p1153 = pneg %p246
        $region94: #{tpu_custom_call.1} parent=91 // pred_check_branch
          %1155 = sbr.rel (%p1153) target = $region96
        $region95: #{tpu_custom_call.1} parent=91 // pred_region
          %s1156 = sand.u32 %s231, 1
          %s1157 = scalar_lea.sflag [#allocation5], %s1156
          %s1158 = sand.u32 %s231, 1
          %s1159 = smul.addr %s1158, 16
          %s1160 = scalar_lea.vmem [#allocation15], %s1159
          %1161 = dma.done %s1157, 256
        $region96: #{tpu_custom_call.1} parent=91 // pred_fallthru
          _
      $region92: #{tpu_custom_call.1} parent=5 // pred_fallthru
        _
    $region6: #{tpu_custom_call.1} parent=1 // loop_footer
      %s32 = sadd.s32 1, %s28
    $region7: #{tpu_custom_call.1} parent=1 // loop_footer_branch
      %27 = sbr.rel target = $region3
    $region8: #{tpu_custom_call.1} parent=1 // loop_exit
      _
    %1162 = vsyncpa [#allocation4], 1
    %s1163 = scalar_lea.sflag [#allocation4], 1
    %1164 = vsyncpa %s1163, 1
    %1165 = vsyncpa [#allocation7], 1
    %s1166 = scalar_lea.sflag [#allocation7], 1
    %1167 = vsyncpa %s1166, 1
    %1168 = vsyncpa [#allocation10], 1
    %s1169 = scalar_lea.sflag [#allocation10], 1
    %1170 = vsyncpa %s1169, 1
    %1171 = vsyncpa [#allocation13], 1
    %s1172 = scalar_lea.sflag [#allocation13], 1
    %1173 = vsyncpa %s1172, 1
    %1174 = vsyncpa [#allocation5], 1
    %s1175 = scalar_lea.sflag [#allocation5], 1
    %1176 = vsyncpa %s1175, 1

</llo_original>
